<compile_context>
chip_gen: v6e
topology: v6e:2x2x1
jax: 0.10.0
libtpu: 0.0.40
codegen_flags: <defaults>
</compile_context>

<pallas_src>
import functools
import math

import jax
import jax.numpy as jnp
from jax import lax
from jax.experimental import pallas as pl
from jax.experimental.pallas import tpu as pltpu


def build_pe_table(max_seq_len: int, d_model: int, dtype=jnp.float32):
    """Mirror of OnnxRelPositionalEncoding.extend_pe (done once at init)."""
    position = jnp.arange(0, max_seq_len, dtype=jnp.float32)[:, None]          # (L, 1)
    div_term = jnp.exp(
        jnp.arange(0, d_model, 2, dtype=jnp.float32) * -(math.log(10000.0) / d_model)
    )                                                                           # (D/2,)
    theta = position * div_term                                                 # (L, D/2)

    pe_positive = jnp.zeros((max_seq_len, d_model), jnp.float32)
    pe_positive = pe_positive.at[:, 0::2].set(jnp.sin(theta))
    pe_positive = pe_positive.at[:, 1::2].set(jnp.cos(theta))

    pe_negative = jnp.zeros((max_seq_len, d_model), jnp.float32)
    pe_negative = pe_negative.at[:, 0::2].set(jnp.sin(-theta))
    pe_negative = pe_negative.at[:, 1::2].set(jnp.cos(-theta))

    pe_positive = jnp.flip(pe_positive, axis=0)[None]                           # (1, L, D)
    pe_negative = pe_negative[1:][None]                                         # (1, L-1, D)
    pe = jnp.concatenate([pe_positive, pe_negative], axis=1)                    # (1, 2L-1, D)
    return pe.astype(dtype)


def _scale_kernel(x_ref, o_ref, *, xscale):
    # Pure VPU elementwise scale; compute in f32 then cast (matches torch's
    # python-float * tensor promotion closely for low-precision dtypes).
    o_ref[...] = (x_ref[...] * jnp.float32(xscale)).astype(o_ref.dtype)


# Per-buffer tile budget (~4 MiB). With double-buffered input + output the
# pipeline uses ~16 MiB of VMEM; vmem_limit_bytes is raised accordingly so the
# sizing works on v5e (16 MiB scoped default), v6e and v7x.
_TILE_BUDGET_BYTES = 4 * 1024 * 1024
_VMEM_LIMIT_BYTES = 32 * 1024 * 1024


def _pick_layout(n_elems: int, itemsize: int):
    """Choose a lane-dense (rows, cols, pad, tr) layout for the scale path.

    NOTE: rows mix batch/time/feature elements — only valid because the kernel
    is purely elementwise; any per-feature logic added later would be wrong.
    """
    cols = None
    # Prefer the widest lane dim that is a multiple of 128 and divides n_elems.
    for c in (2048, 1024, 512, 256, 128):
        if n_elems % c == 0:
            cols = c
            break
    if cols is None:
        # Pad the flattened array up to a multiple of 128 so the kernel is
        # always lane-dense (unmasked vst on the store path).
        cols = 128
    pad = (-n_elems) % cols
    rows = (n_elems + pad) // cols

    # Packed-sublane granularity per dtype (f32: 8, bf16: 16, int8/fp8: 32).
    sub = {4: 8, 2: 16, 1: 32}.get(itemsize, 8)

    tr = _TILE_BUDGET_BYTES // (cols * itemsize)
    tr = max(sub, (tr // sub) * sub)
    if tr >= rows:
        # Whole problem fits within one tile budget -> single full-extent block
        # (full extent is always a legal block dim regardless of alignment).
        tr = rows
    # Otherwise keep the sublane-aligned tr; the pl.cdiv grid's partial last
    # block is safe for this elementwise op (padded reads, masked writes).
    return rows, cols, pad, tr


def rel_positional_encoding(x, pe):
    """x: (B, T, D); pe: (1, 2*max_seq_len-1, D). Returns (x*sqrt(D), pos_emb)."""
    B, T, D = x.shape
    pe_len = pe.shape[1]
    pos_len = 2 * T - 1
    offset = pe_len // 2 - T + 1          # static: pe[:, center-T+1 : center+T]
    xscale = math.sqrt(D)

    # pos_emb: static slice of the constant PE table -> plain JAX (no kernel
    # traffic; only the (2T-1, D) window is ever read).
    pos_emb = lax.slice(pe, (0, offset, 0), (1, offset + pos_len, D))

    # x * sqrt(D): lane-dense slab + 1-D row-tiled grid.
    n = B * T * D
    itemsize = x.dtype.itemsize
    rows, cols, pad, tr = _pick_layout(n, itemsize)

    x_flat = x.reshape(n)
    if pad:
        x_flat = jnp.pad(x_flat, (0, pad))
    x2d = x_flat.reshape(rows, cols)

    grid = (pl.cdiv(rows, tr),)
    kernel = functools.partial(_scale_kernel, xscale=xscale)

    y2d = pl.pallas_call(
        kernel,
        out_shape=jax.ShapeDtypeStruct((rows, cols), x.dtype),
        grid=grid,
        in_specs=[pl.BlockSpec((tr, cols), lambda i: (i, 0))],
        out_specs=pl.BlockSpec((tr, cols), lambda i: (i, 0)),
        compiler_params=pltpu.CompilerParams(
            dimension_semantics=("parallel",),
            vmem_limit_bytes=_VMEM_LIMIT_BYTES,
        ),
        cost_estimate=pl.CostEstimate(
            flops=n,
            transcendentals=0,
            bytes_accessed=2 * n * itemsize,
        ),
    )(x2d)

    y_flat = y2d.reshape(rows * cols)
    if pad:
        y_flat = lax.slice(y_flat, (0,), (n,))
    return y_flat.reshape(B, T, D), pos_emb


if __name__ == "__main__":
    # Small shapes consistent with the module's forward: (batch, time, d_model)
    B, T, D = 2, 8, 32
    MAX_SEQ_LEN = 16

    key = jax.random.PRNGKey(0)
    x = jax.random.normal(key, (B, T, D), dtype=jnp.float32)

    pe = build_pe_table(MAX_SEQ_LEN, D, dtype=x.dtype)   # (1, 31, 32)

    x_scaled, pos_emb = rel_positional_encoding(x, pe)
    jax.block_until_ready((x_scaled, pos_emb))

    # Reference check in plain JAX (same semantics as the PyTorch forward).
    ref_x = x * math.sqrt(D)
    center = pe.shape[1] // 2
    ref_pos = pe[:, center - T + 1 : center + T, :]
    assert x_scaled.shape == (B, T, D)
    assert pos_emb.shape == (1, 2 * T - 1, D)
    assert jnp.allclose(x_scaled, ref_x, atol=1e-6)
    assert jnp.allclose(pos_emb, ref_pos, atol=1e-6)

    print("KERNEL_OK")
</pallas_src>

<mosaic_0001>
module attributes {stable_mosaic.version = 11 : i64} {
  func.func @_scale_kernel(%arg0: i32, %arg1: memref<1x512xf32, #tpu.memory_space<vmem>>, %arg2: memref<1x512xf32, #tpu.memory_space<vmem>>) attributes {dimension_semantics = [#tpu.dimension_semantics<parallel>], iteration_bounds = array<i64: 1>, scalar_prefetch = 0 : i64, scratch_operands = 0 : i64, tpu.core_type = #tpu.core_type<tc>, window_params = [{transform_indices = @transform_0, window_bounds = array<i64: 1, 512>}, {transform_indices = @transform_1, window_bounds = array<i64: 1, 512>}]} {
    %c0 = arith.constant 0 : index
    %c0_0 = arith.constant 0 : index
    %0 = vector.load %arg1[%c0, %c0_0] : memref<1x512xf32, #tpu.memory_space<vmem>>, vector<1x512xf32>
    %cst = arith.constant 5.65685415 : f32
    %1 = vector.broadcast %cst : f32 to vector<1x512xf32>
    %2 = arith.mulf %0, %1 : vector<1x512xf32>
    %c0_1 = arith.constant 0 : index
    %c0_2 = arith.constant 0 : index
    %3 = vector.load %arg2[%c0_1, %c0_2] : memref<1x512xf32, #tpu.memory_space<vmem>>, vector<1x512xf32>
    tpu.vector_store %arg2[%c0_1, %c0_2], %2 {strides = array<i32>} : memref<1x512xf32, #tpu.memory_space<vmem>>, vector<1x512xf32>,
    return
  }
  func.func @transform_0(%arg0: i32) -> (i32, i32) {
    %c0_i32 = arith.constant 0 : i32
    %c0_i32_0 = arith.constant 0 : i32
    return %arg0, %c0_i32 : i32, i32
  }
  func.func @transform_1(%arg0: i32) -> (i32, i32) {
    %c0_i32 = arith.constant 0 : i32
    %c0_i32_0 = arith.constant 0 : i32
    return %arg0, %c0_i32 : i32, i32
  }
}

</mosaic_0001>

<llo_original>
// kernel: tpu_custom_call.1
$region0: #{tpu_custom_call.1}
  #allocation0 [shape = 'u32[]', space=smem, size = 0x4, offset = 0x4, fixed_abs, tag = 'smem constant byte address 0x4 - core index']
  #allocation1 [shape = 'u32[144,128]{1,0:T(1,128)}', space=vmem, size = 0x12000, scoped, tag = 'internal scratch']
  %s0 = inlined_call_operand.hbm [shape: f32[1,512], index: 0, kind: input, shape index: {}]
  %s1 = inlined_call_operand.hbm [shape: f32[1,512], index: 1, kind: output, shape index: {}]
  %s2 = sld [smem:[#allocation0]]
  $region18: #{tpu_custom_call.1} parent=0
    _
  %s4 = ssub.s32 1, %s2
  %s5 = scalar_select 0, %s4, %s2
  $region1: #{tpu_custom_call.1} parent=0
    #allocation2 [shape = 'u8[2048]{0}', space=vmem, size = 0x800, scoped, tag = 'input window, operand 0, single buffered']
    #allocation3 [shape = 's32[1]{0}', space=sflag, size = 0x4, scoped, tag = 'scoped memory for tpu_custom_call.1']
    #allocation4 [shape = 's32[1]{0}', space=sflag, size = 0x4, scoped, tag = 'scoped memory for tpu_custom_call.1']
    #allocation5 [shape = 'u8[2048]{0}', space=vmem, size = 0x800, scoped, tag = 'output window, operand 0, single buffered']
    %6 = vsyncpa [#allocation3], 0
    %7 = vsyncpa [#allocation4], 0
    // Predicated region
    $region2: #{tpu_custom_call.1} parent=1 // pred_check
      _
    $region3: #{tpu_custom_call.1} parent=1 // pred_check_branch
      %9 = sbr.rel (0) target = $region5
    $region4: #{tpu_custom_call.1} parent=1 // pred_region
      %s11 = ssub.s32 64, 64
      %12 = vsyncadd [#allocation3], %s11
      %s14 = sshll.u32 [#allocation2], 4
      %s15 = int_to_ptr.vmem [resolvable:$true] %s14
      %17 = dma.hbm_to_vmem [thread:$0]  %s0, 64, %s15, [#allocation3]
    $region5: #{tpu_custom_call.1} parent=1 // pred_fallthru
      _
    // Predicated region
    $region6: #{tpu_custom_call.1} parent=1 // pred_check
      _
    $region7: #{tpu_custom_call.1} parent=1 // pred_check_branch
      %19 = sbr.rel (0) target = $region9
    $region8: #{tpu_custom_call.1} parent=1 // pred_region
      %20 = dma.done [#allocation3], 64
    $region9: #{tpu_custom_call.1} parent=1 // pred_fallthru
      _
    %v21 = vld [vmem:[#allocation2] sm:$0xf]
    %v22 = vmul.f32 %v21, 5.656854
    %v23 = vlaneseq
    %vm24 = vcmp.ge.s32.totalorder %v23, 0
    %vm25 = vcmp.lt.s32.totalorder %v23, 512
    %vm26 = vmand %vm24, %vm25
    %27 = vst.msk [vmem:[#allocation5] sm:$0xf] %vm26, %v22
    // Predicated region
    $region10: #{tpu_custom_call.1} parent=1 // pred_check
      _
    $region11: #{tpu_custom_call.1} parent=1 // pred_check_branch
      %29 = sbr.rel (0) target = $region13
    $region12: #{tpu_custom_call.1} parent=1 // pred_region
      %s31 = ssub.s32 64, 64
      %32 = vsyncadd [#allocation4], %s31
      %s34 = sshll.u32 [#allocation5], 4
      %s35 = int_to_ptr.vmem [resolvable:$true] %s34
      %37 = dma.vmem_to_hbm [thread:$0]  %s35, 64, %s1, [#allocation4]
    $region13: #{tpu_custom_call.1} parent=1 // pred_fallthru
      _
    // Predicated region
    $region14: #{tpu_custom_call.1} parent=1 // pred_check
      _
    $region15: #{tpu_custom_call.1} parent=1 // pred_check_branch
      %39 = sbr.rel (0) target = $region17
    $region16: #{tpu_custom_call.1} parent=1 // pred_region
      %40 = dma.done [#allocation4], 64
    $region17: #{tpu_custom_call.1} parent=1 // pred_fallthru
      _
    %41 = vsyncpa [#allocation3], 1
    %42 = vsyncpa [#allocation4], 1

</llo_original>
